<compile_context>
chip_gen: v6e
topology: v6e:2x2x1
jax: 0.10.0
libtpu: 0.0.40
codegen_flags: <defaults>
</compile_context>

<pallas_src>
import jax
import jax.numpy as jnp
from jax.experimental import pallas as pl
from jax.experimental.pallas import tpu as pltpu


def prenet_kernel(x_ref, wt_ref, b_ref, o_ref):
    # x_ref:  (TB, K)   current batch tile (f32 or bf16)
    # wt_ref: (K, N)    scaler-folded, pre-transposed weight
    # b_ref:  (1, N)    scaler-folded bias (f32)
    # o_ref:  (TB, N)
    y = jnp.dot(x_ref[...], wt_ref[...], preferred_element_type=jnp.float32)
    o_ref[...] = (y + b_ref[...]).astype(o_ref.dtype)


def fold_prenet_params(mean, scale, weight, bias, *, dtype=jnp.float32):
    """Fold the StandardScaler into the Linear layer (hoist out of the hot path).

    Returns (wt, b2) with wt: [input_dim, model_dim], b2: [1, model_dim].
    """
    # sklearn sets scale_ = 1 for constant features; guard against 0 anyway.
    safe_scale = jnp.where(scale == 0, jnp.ones_like(scale), scale)
    inv_scale = (1.0 / safe_scale).astype(jnp.float32)
    wt = (weight.T.astype(jnp.float32) * inv_scale[:, None]).astype(dtype)
    b_eff = (bias.astype(jnp.float32)
             - (mean.astype(jnp.float32) * inv_scale) @ weight.T.astype(jnp.float32))
    return wt, b_eff.reshape(1, -1).astype(jnp.float32)


def prenet_forward_folded(x, wt, b2, *, tb=None, single_buffer_weights=True):
    """PreNet forward with pre-folded params.  x: [B, K], wt: [K, N], b2: [1, N]."""
    B, K = x.shape
    K2, N = wt.shape
    assert K == K2, (K, K2)
    out_dtype = wt.dtype
    x = x.astype(out_dtype)

    # ---- batch tile heuristic -------------------------------------------
    sub = 16 if jnp.dtype(out_dtype) == jnp.dtype(jnp.bfloat16) else 8
    if tb is None:
        max_tile = 512
        n_steps = pl.cdiv(B, max_tile)
        if n_steps < 2 and B >= 2 * sub:
            n_steps = 2          # >= 2 grid steps -> megacore sharding on v7x
        tb = max(sub, pl.cdiv(pl.cdiv(B, n_steps), sub) * sub)
    grid = (pl.cdiv(B, tb),)

    # ---- VMEM budget from actual tile sizes ------------------------------
    itemsize = jnp.dtype(out_dtype).itemsize
    vmem_bytes = (2 * tb * K * itemsize        # double-buffered x tiles
                  + K * N * itemsize           # weight (ideally single-buffered)
                  + 8 * N * 4                  # bias tile (sublane-padded, f32)
                  + 2 * tb * N * itemsize)     # double-buffered output tiles
    vmem_limit = int(min(64 << 20, max(16 << 20, 2 * vmem_bytes)))

    def run(single_buffer):
        const_kw = {"pipeline_mode": pl.Buffered(1)} if single_buffer else {}
        in_specs = [
            pl.BlockSpec((tb, K), lambda i: (i, 0)),
            pl.BlockSpec((K, N), lambda i: (0, 0), **const_kw),
            pl.BlockSpec((1, N), lambda i: (0, 0), **const_kw),
        ]
        out_specs = pl.BlockSpec((tb, N), lambda i: (i, 0))
        return pl.pallas_call(
            prenet_kernel,
            out_shape=jax.ShapeDtypeStruct((B, N), out_dtype),
            grid_spec=pltpu.PrefetchScalarGridSpec(
                num_scalar_prefetch=0,
                grid=grid,
                in_specs=in_specs,
                out_specs=out_specs,
            ),
            compiler_params=pltpu.CompilerParams(
                dimension_semantics=("parallel",),
                vmem_limit_bytes=vmem_limit,
            ),
        )(x, wt, b2)

    if single_buffer_weights:
        try:
            return run(True)
        except Exception:
            pass  # older/newer Pallas may reject buffer_count=1; use default.
    return run(False)


def prenet_forward(x, mean, scale, weight, bias, *, tb=None, use_bf16=False):
    """Convenience wrapper: fold params then run the fused kernel."""
    dtype = jnp.bfloat16 if use_bf16 else jnp.float32
    wt, b2 = fold_prenet_params(mean, scale, weight, bias, dtype=dtype)
    return prenet_forward_folded(x, wt, b2, tb=tb)


if __name__ == "__main__":
    key = jax.random.PRNGKey(0)
    # Small, module-consistent shapes; B chosen NOT to divide the batch tile
    # so the ragged-last-block (masked store) path is exercised.
    B, input_dim, model_dim = 19, 32, 64

    k_x, k_w, k_b, k_m, k_s = jax.random.split(key, 5)
    x = jax.random.normal(k_x, (B, input_dim), dtype=jnp.float32)
    weight = jax.random.normal(k_w, (model_dim, input_dim), dtype=jnp.float32) * 0.05
    bias = jax.random.normal(k_b, (model_dim,), dtype=jnp.float32) * 0.01
    mean = jax.random.normal(k_m, (input_dim,), dtype=jnp.float32)
    scale = jax.random.uniform(k_s, (input_dim,), minval=0.5, maxval=2.0,
                               dtype=jnp.float32)

    # Pure-JAX reference: scaler.transform then Linear.
    x_norm_ref = (x - mean[None, :]) / scale[None, :]
    ref = x_norm_ref @ weight.T + bias[None, :]

    # f32 path (default): fold once (inference-style), then forward.
    wt_f32, b2_f32 = fold_prenet_params(mean, scale, weight, bias)
    out = prenet_forward_folded(x, wt_f32, b2_f32)
    out = jax.block_until_ready(out)
    assert out.shape == (B, model_dim)
    assert out.dtype == jnp.float32
    assert jnp.allclose(out, ref, atol=1e-4, rtol=1e-4)

    # Optional bf16 storage path (halves HBM traffic; relaxed tolerance).
    out_bf16 = prenet_forward(x, mean, scale, weight, bias, use_bf16=True)
    out_bf16 = jax.block_until_ready(out_bf16)
    assert out_bf16.shape == (B, model_dim)
    assert jnp.allclose(out_bf16.astype(jnp.float32), ref, atol=5e-2, rtol=5e-2)

    print("KERNEL_OK")
</pallas_src>

<mosaic_0001>
module attributes {stable_mosaic.version = 11 : i64} {
  func.func @prenet_kernel(%arg0: i32, %arg1: memref<16x32xf32, #tpu.memory_space<vmem>>, %arg2: memref<32x64xf32, #tpu.memory_space<vmem>>, %arg3: memref<1x64xf32, #tpu.memory_space<vmem>>, %arg4: memref<16x64xf32, #tpu.memory_space<vmem>>) attributes {dimension_semantics = [#tpu.dimension_semantics<parallel>], iteration_bounds = array<i64: 2>, scalar_prefetch = 0 : i64, scratch_operands = 0 : i64, tpu.core_type = #tpu.core_type<tc>, window_params = [{transform_indices = @transform_0, window_bounds = array<i64: 16, 32>}, {pipeline_mode = #tpu.pipeline_mode<synchronous>, transform_indices = @transform_1, window_bounds = array<i64: 32, 64>}, {pipeline_mode = #tpu.pipeline_mode<synchronous>, transform_indices = @transform_2, window_bounds = array<i64: 1, 64>}, {transform_indices = @transform_3, window_bounds = array<i64: 16, 64>}]} {
    %c0 = arith.constant 0 : index
    %c0_0 = arith.constant 0 : index
    %0 = vector.load %arg1[%c0, %c0_0] : memref<16x32xf32, #tpu.memory_space<vmem>>, vector<16x32xf32>
    %c0_1 = arith.constant 0 : index
    %c0_2 = arith.constant 0 : index
    %1 = vector.load %arg2[%c0_1, %c0_2] : memref<32x64xf32, #tpu.memory_space<vmem>>, vector<32x64xf32>
    %cst = arith.constant dense<0.000000e+00> : vector<16x64xf32>
    %2 = tpu.matmul %0, %1, %cst {dimension_numbers = #tpu.dot_dimension_numbers<[1], [0], [0], [1], [0, 0, 1, 1], [], []>} : vector<16x32xf32>, vector<32x64xf32>, vector<16x64xf32> -> vector<16x64xf32>
    %c0_3 = arith.constant 0 : index
    %c0_4 = arith.constant 0 : index
    %3 = vector.load %arg3[%c0_3, %c0_4] : memref<1x64xf32, #tpu.memory_space<vmem>>, vector<1x64xf32>
    %4 = vector.broadcast %3 : vector<1x64xf32> to vector<16x64xf32>
    %5 = arith.addf %2, %4 : vector<16x64xf32>
    %c0_5 = arith.constant 0 : index
    %c0_6 = arith.constant 0 : index
    %6 = vector.load %arg4[%c0_5, %c0_6] : memref<16x64xf32, #tpu.memory_space<vmem>>, vector<16x64xf32>
    tpu.vector_store %arg4[%c0_5, %c0_6], %5 {strides = array<i32>} : memref<16x64xf32, #tpu.memory_space<vmem>>, vector<16x64xf32>,
    return
  }
  func.func @transform_0(%arg0: i32) -> (i32, i32) {
    %c0_i32 = arith.constant 0 : i32
    %c0_i32_0 = arith.constant 0 : i32
    return %arg0, %c0_i32 : i32, i32
  }
  func.func @transform_1(%arg0: i32) -> (i32, i32) {
    %c0_i32 = arith.constant 0 : i32
    %c0_i32_0 = arith.constant 0 : i32
    %c0_i32_1 = arith.constant 0 : i32
    return %c0_i32, %c0_i32_0 : i32, i32
  }
  func.func @transform_2(%arg0: i32) -> (i32, i32) {
    %c0_i32 = arith.constant 0 : i32
    %c0_i32_0 = arith.constant 0 : i32
    %c0_i32_1 = arith.constant 0 : i32
    return %c0_i32, %c0_i32_0 : i32, i32
  }
  func.func @transform_3(%arg0: i32) -> (i32, i32) {
    %c0_i32 = arith.constant 0 : i32
    %c0_i32_0 = arith.constant 0 : i32
    return %arg0, %c0_i32 : i32, i32
  }
}

module attributes {stable_mosaic.version = 11 : i64} {
  func.func @prenet_kernel(%arg0: i32, %arg1: memref<16x32xf32, #tpu.memory_space<vmem>>, %arg2: memref<32x64xf32, #tpu.memory_space<vmem>>, %arg3: memref<1x64xf32, #tpu.memory_space<vmem>>, %arg4: memref<16x64xf32, #tpu.memory_space<vmem>>) attributes {dimension_semantics = [#tpu.dimension_semantics<parallel>], iteration_bounds = array<i64: 2>, scalar_prefetch = 0 : i64, scratch_operands = 0 : i64, tpu.core_type = #tpu.core_type<tc>, window_params = [{transform_indices = @transform_0, window_bounds = array<i64: 16, 32>}, {pipeline_mode = #tpu.pipeline_mode<synchronous>, transform_indices = @transform_1, window_bounds = array<i64: 32, 64>}, {pipeline_mode = #tpu.pipeline_mode<synchronous>, transform_indices = @transform_2, window_bounds = array<i64: 1, 64>}, {transform_indices = @transform_3, window_bounds = array<i64: 16, 64>}]} {
    %c0 = arith.constant 0 : index
    %c0_0 = arith.constant 0 : index
    %0 = vector.load %arg1[%c0, %c0_0] : memref<16x32xf32, #tpu.memory_space<vmem>>, vector<16x32xf32>
    %c0_1 = arith.constant 0 : index
    %c0_2 = arith.constant 0 : index
    %1 = vector.load %arg2[%c0_1, %c0_2] : memref<32x64xf32, #tpu.memory_space<vmem>>, vector<32x64xf32>
    %cst = arith.constant dense<0.000000e+00> : vector<16x64xf32>
    %2 = tpu.matmul %0, %1, %cst {dimension_numbers = #tpu.dot_dimension_numbers<[1], [0], [0], [1], [0, 0, 1, 1], [], []>} : vector<16x32xf32>, vector<32x64xf32>, vector<16x64xf32> -> vector<16x64xf32>
    %c0_3 = arith.constant 0 : index
    %c0_4 = arith.constant 0 : index
    %3 = vector.load %arg3[%c0_3, %c0_4] : memref<1x64xf32, #tpu.memory_space<vmem>>, vector<1x64xf32>
    %4 = vector.broadcast %3 : vector<1x64xf32> to vector<16x64xf32>
    %5 = arith.addf %2, %4 : vector<16x64xf32>
    %c0_5 = arith.constant 0 : index
    %c0_6 = arith.constant 0 : index
    %6 = vector.load %arg4[%c0_5, %c0_6] : memref<16x64xf32, #tpu.memory_space<vmem>>, vector<16x64xf32>
    tpu.vector_store %arg4[%c0_5, %c0_6], %5 {strides = array<i32>} : memref<16x64xf32, #tpu.memory_space<vmem>>, vector<16x64xf32>,
    return
  }
  func.func @transform_0(%arg0: i32) -> (i32, i32) {
    %c0_i32 = arith.constant 0 : i32
    %c0_i32_0 = arith.constant 0 : i32
    return %arg0, %c0_i32 : i32, i32
  }
  func.func @transform_1(%arg0: i32) -> (i32, i32) {
    %c0_i32 = arith.constant 0 : i32
    %c0_i32_0 = arith.constant 0 : i32
    %c0_i32_1 = arith.constant 0 : i32
    return %c0_i32, %c0_i32_0 : i32, i32
  }
  func.func @transform_2(%arg0: i32) -> (i32, i32) {
    %c0_i32 = arith.constant 0 : i32
    %c0_i32_0 = arith.constant 0 : i32
    %c0_i32_1 = arith.constant 0 : i32
    return %c0_i32, %c0_i32_0 : i32, i32
  }
  func.func @transform_3(%arg0: i32) -> (i32, i32) {
    %c0_i32 = arith.constant 0 : i32
    %c0_i32_0 = arith.constant 0 : i32
    return %arg0, %c0_i32 : i32, i32
  }
}

</mosaic_0001>

<llo_original>
// kernel: tpu_custom_call.1
$region0: #{tpu_custom_call.1}
  #allocation0 [shape = 'u32[]', space=smem, size = 0x4, offset = 0x4, fixed_abs, tag = 'smem constant byte address 0x4 - core index']
  #allocation1 [shape = 'u32[144,128]{1,0:T(1,128)}', space=vmem, size = 0x12000, scoped, tag = 'internal scratch']
  %s0 = inlined_call_operand.hbm [shape: f32[19,32], index: 0, kind: input, shape index: {}]
  %s1 = inlined_call_operand.hbm [shape: f32[32,64], index: 1, kind: input, shape index: {}]
  %s2 = inlined_call_operand.vmem [shape: f32[1,64], index: 2, kind: input, shape index: {}]
  %s3 = inlined_call_operand.hbm [shape: f32[19,64], index: 3, kind: output, shape index: {}]
  %s4 = sld [smem:[#allocation0]]
  $region53: #{tpu_custom_call.1} parent=0
    _
  %s6 = ssub.s32 1, %s4
  %s7 = scalar_select 0, %s6, %s4
  $region1: #{tpu_custom_call.1} parent=0
    #allocation2 [shape = 'u8[16384]{0}', space=vmem, size = 0x4000, scoped, tag = 'input window, operand 0']
    #allocation3 [shape = 's32[2]{0}', space=sflag, size = 0x8, scoped, tag = 'scoped memory for tpu_custom_call.1']
    #allocation4 [shape = 's32[2]{0}', space=sflag, size = 0x8, scoped, tag = 'scoped memory for tpu_custom_call.1']
    #allocation5 [shape = 'u8[16384]{0}', space=vmem, size = 0x4000, scoped, tag = 'input window, operand 1, single buffered']
    #allocation6 [shape = 's32[1]{0}', space=sflag, size = 0x4, scoped, tag = 'scoped memory for tpu_custom_call.1']
    #allocation7 [shape = 'u8[16384]{0}', space=vmem, size = 0x4000, scoped, tag = 'output window, operand 0']
    %8 = vsyncpa [#allocation3], 0
    %s9 = scalar_lea.sflag [#allocation3], 1
    %10 = vsyncpa %s9, 0
    %11 = vsyncpa [#allocation6], 0
    %12 = vsyncpa [#allocation4], 0
    %s13 = scalar_lea.sflag [#allocation4], 1
    %14 = vsyncpa %s13, 0
    loop: start=0, step=1, limit=4
    $region2: #{tpu_custom_call.1} parent=1 // loop_pre_header
      _
    $region3: #{tpu_custom_call.1} parent=1 // loop_header
      %s16 = sphi 0, %s20
      %p17 = scmp.ge.s32.totalorder %s16, 4
      %s26 = sphi 0, %s28
      %s29 = sphi 0, %s26
      %s30 = sphi 0, %s29
      %s46 = sphi 0, %s30
      %s50 = sphi 0, %s50
      %s52 = sphi 0, %s50
      %s53 = sphi 0, %s52
      %s67 = sphi 0, %s53
      %s71 = sphi 0, %s71
      %s73 = sphi 0, %s71
      %s74 = sphi 0, %s73
      %s88 = sphi 0, %s74
      %s94 = sphi 0, %s96
      %s97 = sphi 0, %s94
      %s98 = sphi 0, %s97
      %s114 = sphi 0, %s98
    $region4: #{tpu_custom_call.1} parent=1 // loop_header_branch
      %19 = sbr.rel (%p17) target = $region8
    $region5: #{tpu_custom_call.1} parent=1 // loop_body
      %s21 = ssub.s32 %s16, 1
      %s22 = ssub.s32 %s16, 2
      %s23 = sadd.s32 %s16, 1
      %s24 = ssub.s32 %s16, %s23
      %p25 = scmp.eq.s32.totalorder %s24, 0
      %s27 = sadd.s32 %s26, 1
      %s28 = scalar_select %p25, %s26, %s27
      %p31 = pneg %p25
      %p32 = scmp.eq.s32.totalorder %s16, 1
      %p33 = por %p31, %p32
      %p34 = scmp.ne.s32.totalorder %s26, %s29
      %p35 = scmp.eq.s32.totalorder %s16, 0
      %p36 = por %p34, %p35
      %p37 = scmp.ne.s32.totalorder %s26, %s29
      %p38 = scmp.eq.s32.totalorder %s21, 1
      %p39 = por %p37, %p38
      %p40 = scmp.ne.s32.totalorder %s29, %s30
      %p41 = scmp.eq.s32.totalorder %s21, 0
      %p42 = por %p40, %p41
      %p43 = scmp.ne.s32.totalorder %s29, %s30
      %p44 = scmp.eq.s32.totalorder %s22, 1
      %p45 = por %p43, %p44
      %p47 = scmp.ne.s32.totalorder %s30, %s46
      %p48 = scmp.eq.s32.totalorder %s22, 0
      %p49 = por %p47, %p48
      %s51 = sadd.s32 %s50, 1
      %p54 = scmp.eq.s32.totalorder %s16, 1
      %p55 = scmp.ne.s32.totalorder %s50, %s52
      %p56 = scmp.eq.s32.totalorder %s16, 0
      %p57 = por %p55, %p56
      %p58 = scmp.ne.s32.totalorder %s50, %s52
      %p59 = scmp.eq.s32.totalorder %s21, 1
      %p60 = por %p58, %p59
      %p61 = scmp.ne.s32.totalorder %s52, %s53
      %p62 = scmp.eq.s32.totalorder %s21, 0
      %p63 = por %p61, %p62
      %p64 = scmp.ne.s32.totalorder %s52, %s53
      %p65 = scmp.eq.s32.totalorder %s22, 1
      %p66 = por %p64, %p65
      %p68 = scmp.ne.s32.totalorder %s53, %s67
      %p69 = scmp.eq.s32.totalorder %s22, 0
      %p70 = por %p68, %p69
      %s72 = sadd.s32 %s71, 1
      %p75 = scmp.eq.s32.totalorder %s16, 1
      %p76 = scmp.ne.s32.totalorder %s71, %s73
      %p77 = scmp.eq.s32.totalorder %s16, 0
      %p78 = por %p76, %p77
      %p79 = scmp.ne.s32.totalorder %s71, %s73
      %p80 = scmp.eq.s32.totalorder %s21, 1
      %p81 = por %p79, %p80
      %p82 = scmp.ne.s32.totalorder %s73, %s74
      %p83 = scmp.eq.s32.totalorder %s21, 0
      %p84 = por %p82, %p83
      %p85 = scmp.ne.s32.totalorder %s73, %s74
      %p86 = scmp.eq.s32.totalorder %s22, 1
      %p87 = por %p85, %p86
      %p89 = scmp.ne.s32.totalorder %s74, %s88
      %p90 = scmp.eq.s32.totalorder %s22, 0
      %p91 = por %p89, %p90
      %s92 = ssub.s32 %s16, %s23
      %p93 = scmp.eq.s32.totalorder %s92, 0
      %s95 = sadd.s32 %s94, 1
      %s96 = scalar_select %p93, %s94, %s95
      %p99 = pneg %p93
      %p100 = scmp.eq.s32.totalorder %s16, 1
      %p101 = por %p99, %p100
      %p102 = scmp.ne.s32.totalorder %s94, %s97
      %p103 = scmp.eq.s32.totalorder %s16, 0
      %p104 = por %p102, %p103
      %p105 = scmp.ne.s32.totalorder %s94, %s97
      %p106 = scmp.eq.s32.totalorder %s21, 1
      %p107 = por %p105, %p106
      %p108 = scmp.ne.s32.totalorder %s97, %s98
      %p109 = scmp.eq.s32.totalorder %s21, 0
      %p110 = por %p108, %p109
      %p111 = scmp.ne.s32.totalorder %s97, %s98
      %p112 = scmp.eq.s32.totalorder %s22, 1
      %p113 = por %p111, %p112
      %p115 = scmp.ne.s32.totalorder %s98, %s114
      %p116 = scmp.eq.s32.totalorder %s22, 0
      %p117 = por %p115, %p116
      %p118 = scmp.le.s32.totalorder 1, %s16
      %p119 = scmp.lt.s32.totalorder %s16, 3
      %p120 = pnand %p118, %p119
      %p121 = pneg %p120
      // Predicated region
      $region9: #{tpu_custom_call.1} parent=5 // pred_check
        _
      $region10: #{tpu_custom_call.1} parent=5 // pred_check_branch
        %123 = sbr.rel (%p120) target = $region12
      $region11: #{tpu_custom_call.1} parent=5 // pred_region
        %s124 = ssub.s32 %s16, 1
        // Predicated region
        $region13: #{tpu_custom_call.1} parent=11 // pred_check
          %p125 = pneg %p63
        $region14: #{tpu_custom_call.1} parent=11 // pred_check_branch
          %127 = sbr.rel (%p125) target = $region16
        $region15: #{tpu_custom_call.1} parent=11 // pred_region
          %s129 = ssub.s32 512, 512
          %130 = vsyncadd [#allocation6], %s129
          %s131 = sshll.u32 [#allocation5], 4
          %s132 = int_to_ptr.vmem [resolvable:$true] %s131
          %137 = dma.hbm_to_vmem [thread:$0]  %s1, 512, %s132, [#allocation6], 128, 128, 8
        $region16: #{tpu_custom_call.1} parent=11 // pred_fallthru
          _
        // Predicated region
        $region17: #{tpu_custom_call.1} parent=11 // pred_check
          %p138 = pneg %p84
        $region18: #{tpu_custom_call.1} parent=11 // pred_check_branch
          %140 = sbr.rel (%p138) target = $region20
        $region19: #{tpu_custom_call.1} parent=11 // pred_region
          _
        $region20: #{tpu_custom_call.1} parent=11 // pred_fallthru
          _
      $region12: #{tpu_custom_call.1} parent=5 // pred_fallthru
        _
      %p141 = scmp.lt.s32.totalorder %s16, 2
      // Predicated region
      $region21: #{tpu_custom_call.1} parent=5 // pred_check
        %p142 = pneg %p141
      $region22: #{tpu_custom_call.1} parent=5 // pred_check_branch
        %144 = sbr.rel (%p142) target = $region24
      $region23: #{tpu_custom_call.1} parent=5 // pred_region
        // Predicated region
        $region25: #{tpu_custom_call.1} parent=23 // pred_check
          %p145 = pneg %p36
        $region26: #{tpu_custom_call.1} parent=23 // pred_check_branch
          %147 = sbr.rel (%p145) target = $region28
        $region27: #{tpu_custom_call.1} parent=23 // pred_region
          %s148 = sand.u32 %s26, 1
          %s149 = scalar_lea.sflag [#allocation3], %s148
          %s150 = sand.u32 %s26, 1
          %s151 = smul.addr %s150, 16
          %s152 = scalar_lea.vmem [#allocation2], %s151
          %s153 = smul.u32 2, %s16
          %s154 = ssub.s32 3, %s153
          %p155 = scmp.lt.s32.totalorder %s154, 2
          %s156 = scalar_select %p155, %s154, 2
          %s157 = smul.u32 128, %s156
          %s159 = ssub.s32 256, %s157
          %160 = vsyncadd %s149, %s159
          %p161 = scmp.ne.s32.totalorder 0, %s157
          %s162 = smul.addr %s153, 128
          %s163 = scalar_lea.hbm %s0, %s162
          %s164 = smul.u32 8, %s156
          %s165 = sshll.u32 %s152, 4
          %s166 = int_to_ptr.vmem [resolvable:$true] %s165
          %s167 = sshll.u32 %s164, 4
          %171 = dma.hbm_to_vmem [thread:$0]  (%p161), %s163, %s167, %s166, %s149, 128, 128, 8
        $region28: #{tpu_custom_call.1} parent=23 // pred_fallthru
          _
      $region24: #{tpu_custom_call.1} parent=5 // pred_fallthru
        _
      %p172 = scmp.le.s32.totalorder 1, %s16
      %p173 = scmp.lt.s32.totalorder %s16, 3
      %p174 = pnand %p172, %p173
      %p175 = pneg %p174
      // Predicated region
      $region29: #{tpu_custom_call.1} parent=5 // pred_check
        _
      $region30: #{tpu_custom_call.1} parent=5 // pred_check_branch
        %177 = sbr.rel (%p174) target = $region32
      $region31: #{tpu_custom_call.1} parent=5 // pred_region
        %s178 = ssub.s32 %s16, 1
        %s179 = sand.u32 %s29, 1
        %s180 = scalar_lea.sflag [#allocation3], %s179
        %s181 = sand.u32 %s29, 1
        %s182 = smul.addr %s181, 16
        %s183 = scalar_lea.vmem [#allocation2], %s182
        // Predicated region
        $region33: #{tpu_custom_call.1} parent=31 // pred_check
          %p184 = pneg %p42
        $region34: #{tpu_custom_call.1} parent=31 // pred_check_branch
          %186 = sbr.rel (%p184) target = $region36
        $region35: #{tpu_custom_call.1} parent=31 // pred_region
          %187 = dma.done %s180, 256
        $region36: #{tpu_custom_call.1} parent=31 // pred_fallthru
          _
        // Predicated region
        $region37: #{tpu_custom_call.1} parent=31 // pred_check
          %p188 = pneg %p63
        $region38: #{tpu_custom_call.1} parent=31 // pred_check_branch
          %190 = sbr.rel (%p188) target = $region40
        $region39: #{tpu_custom_call.1} parent=31 // pred_region
          %191 = dma.done [#allocation6], 512
        $region40: #{tpu_custom_call.1} parent=31 // pred_fallthru
          _
        %s192 = sand.u32 %s29, 1
        %s193 = scalar_lea.sflag [#allocation3], %s192
        %s194 = sand.u32 %s29, 1
        %s195 = smul.addr %s194, 16
        %s196 = scalar_lea.vmem [#allocation2], %s195
        %p197 = pneg %p42
        %p198 = pneg %p39
        %p199 = pneg %p63
        %p200 = pneg %p60
        %p201 = pneg %p84
        %p202 = pneg %p81
        %p203 = pneg %p110
        %p204 = pneg %p107
        %s205 = sand.u32 %s97, 1
        %s206 = scalar_lea.sflag [#allocation4], %s205
        %s207 = sand.u32 %s97, 1
        %s208 = smul.addr %s207, 16
        %s209 = scalar_lea.vmem [#allocation7], %s208
        %s210 = smul.u32 2, %s21
        %s211 = ssub.s32 3, %s210
        %p212 = scmp.lt.s32.totalorder %s211, 2
        %s213 = scalar_select %p212, %s211, 2
        %s214 = smul.u32 128, %s213
        %s215 = smul.u32 2, %s21
        %s216 = ssub.s32 3, %s215
        %p217 = scmp.lt.s32.totalorder %s216, 2
        %s218 = scalar_select %p217, %s216, 2
        %s219 = smul.u32 128, %s218
        %v220 = vld [vmem:[%s183] sm:$0xff]
        %v221 = vld [vmem:[%s183 + $0x8] sm:$0xff]
        %v222 = vld [vmem:[#allocation5] sm:$0xff]
        %v223 = vld [vmem:[#allocation5 + $0x8] sm:$0xff]
        %v224 = vld [vmem:[#allocation5 + $0x10] sm:$0xff]
        %v225 = vld [vmem:[#allocation5 + $0x18] sm:$0xff]
        %v226 = vld [vmem:[%s2] sm:$0x1]
        %v228 = vlaneseq
        %v229 = vshrl.u32 %v228, 7
        %v230 = vsub.s32 0, %v229
        %v231 = vrot.slane %v226, %v230
        %vm233 = vcmask 261120
        %v235 = vsel %vm233, %v220, 0
        %v238 = vsel %vm233, %v221, 0
        %240 = vmatprep.subr.mxu0 0.0
        %241 = vmatpush1.msra.mxu0 0.0
        %242 = vmatprep.subr.mxu0 0.0
        %243 = vmatpush1.msra.mxu0 0.0
        %244 = vmatprep.subr.mxu0 0.0
        %245 = vmatpush1.msra.mxu0 0.0
        %246 = vmatprep.subr.mxu0 0.0
        %247 = vmatpush1.msra.mxu0 0.0
        %248 = vmatprep.subr.mxu0 0.0
        %249 = vmatpush1.msra.mxu0 0.0
        %250 = vmatprep.subr.mxu0 0.0
        %251 = vmatpush1.msra.mxu0 0.0
        %252 = vmatprep.subr.mxu0 0.0
        %253 = vmatpush1.msra.mxu0 0.0
        %254 = vmatprep.subr.mxu0 0.0
        %255 = vmatpush1.msra.mxu0 0.0
        %256 = vmatprep.subr.mxu0 0.0
        %257 = vmatpush1.msra.mxu0 0.0
        %258 = vmatprep.subr.mxu0 0.0
        %259 = vmatpush1.msra.mxu0 0.0
        %260 = vmatprep.subr.mxu0 0.0
        %261 = vmatpush1.msra.mxu0 0.0
        %262 = vmatprep.subr.mxu0 0.0
        %263 = vmatpush1.msra.mxu0 0.0
        %264 = vmatprep.subr.mxu0 0.0
        %265 = vmatpush1.msra.mxu0 %v225
        %266 = vmatprep.subr.mxu0 0.0
        %267 = vmatpush1.msra.mxu0 %v224
        %268 = vmatprep.subr.mxu0 0.0
        %269 = vmatpush1.msra.mxu0 %v223
        %270 = vmatprep.subr.mxu0 0.0
        %271 = vmatpush1.msra.mxu0 %v222
        %272 = vmatprep.subr.mxu0 0.0
        %273 = vmatpush2.msra.mxu0 0.0
        %274 = vmatprep.subr.mxu0 0.0
        %275 = vmatpush2.msra.mxu0 0.0
        %276 = vmatprep.subr.mxu0 0.0
        %277 = vmatpush2.msra.mxu0 0.0
        %278 = vmatprep.subr.mxu0 0.0
        %279 = vmatpush2.msra.mxu0 0.0
        %280 = vmatprep.subr.mxu0 0.0
        %281 = vmatpush2.msra.mxu0 0.0
        %282 = vmatprep.subr.mxu0 0.0
        %283 = vmatpush2.msra.mxu0 0.0
        %284 = vmatprep.subr.mxu0 0.0
        %285 = vmatpush2.msra.mxu0 0.0
        %286 = vmatprep.subr.mxu0 0.0
        %287 = vmatpush2.msra.mxu0 0.0
        %288 = vmatprep.subr.mxu0 0.0
        %289 = vmatpush2.msra.mxu0 0.0
        %290 = vmatprep.subr.mxu0 0.0
        %291 = vmatpush2.msra.mxu0 0.0
        %292 = vmatprep.subr.mxu0 0.0
        %293 = vmatpush2.msra.mxu0 0.0
        %294 = vmatprep.subr.mxu0 0.0
        %295 = vmatpush2.msra.mxu0 0.0
        %296 = vmatprep.subr.mxu0 0.0
        %297 = vmatpush2.msra.mxu0 0.0
        %298 = vmatprep.subr.mxu0 0.0
        %299 = vmatpush2.msra.mxu0 0.0
        %300 = vmatprep.subr.mxu0 0.0
        %301 = vmatpush2.msra.mxu0 0.0
        %302 = vmatprep.subr.mxu0 0.0
        %303 = vmatpush2.msra.mxu0 0.0
        %304 = vmatprep.mubr.f32.mxu0 0.0
        %305 = vmatmul.mubr.f32.gmra.mxu0 %v235
        %v306 = vpop.f32.mrf.mxu0
        %v307 = vadd.f32 %v231, %v306
        %v308 = vpop.f32.mrf.mxu0
        %309 = vmatprep.mubr.f32.mxu0 0.0
        %310 = vmatmul.mubr.f32.gmra.mxu0 %v238
        %v311 = vpop.f32.mrf.mxu0
        %v312 = vadd.f32 %v231, %v311
        %v313 = vpop.f32.mrf.mxu0
        %314 = vdwg.mxu0
        %vm315 = vcmask 523264
        %316 = vst.msk [vmem:[%s209] sm:$0xff] %vm315, %v307
        %317 = vst.msk [vmem:[%s209 + $0x8] sm:$0xff] %vm315, %v312
        %s318 = sand.u32 %s97, 1
        %s319 = scalar_lea.sflag [#allocation4], %s318
        %s320 = sand.u32 %s97, 1
        %s321 = smul.addr %s320, 16
        %s322 = scalar_lea.vmem [#allocation7], %s321
        // Predicated region
        $region41: #{tpu_custom_call.1} parent=31 // pred_check
          %p323 = pneg %p107
        $region42: #{tpu_custom_call.1} parent=31 // pred_check_branch
          %325 = sbr.rel (%p323) target = $region44
        $region43: #{tpu_custom_call.1} parent=31 // pred_region
          %s326 = smul.u32 2, %s21
          %s327 = ssub.s32 3, %s326
          %p328 = scmp.lt.s32.totalorder %s327, 2
          %s329 = scalar_select %p328, %s327, 2
          %s330 = smul.u32 128, %s329
          %s332 = ssub.s32 256, %s330
          %333 = vsyncadd %s319, %s332
          %p334 = scmp.ne.s32.totalorder 0, %s330
          %s335 = smul.addr %s326, 128
          %s336 = scalar_lea.hbm %s3, %s335
          %s337 = smul.u32 8, %s329
          %s338 = sshll.u32 %s322, 4
          %s339 = int_to_ptr.vmem [resolvable:$true] %s338
          %s340 = sshll.u32 %s337, 4
          %344 = dma.vmem_to_hbm [thread:$0]  (%p334), %s339, %s340, %s336, %s319, 128, 128, 8
        $region44: #{tpu_custom_call.1} parent=31 // pred_fallthru
          _
      $region32: #{tpu_custom_call.1} parent=5 // pred_fallthru
        _
      %p345 = scmp.le.s32.totalorder 2, %s16
      // Predicated region
      $region45: #{tpu_custom_call.1} parent=5 // pred_check
        %p346 = pneg %p345
      $region46: #{tpu_custom_call.1} parent=5 // pred_check_branch
        %348 = sbr.rel (%p346) target = $region48
      $region47: #{tpu_custom_call.1} parent=5 // pred_region
        %s349 = ssub.s32 %s16, 2
        // Predicated region
        $region49: #{tpu_custom_call.1} parent=47 // pred_check
          %p350 = pneg %p113
        $region50: #{tpu_custom_call.1} parent=47 // pred_check_branch
          %352 = sbr.rel (%p350) target = $region52
        $region51: #{tpu_custom_call.1} parent=47 // pred_region
          %s353 = sand.u32 %s98, 1
          %s354 = scalar_lea.sflag [#allocation4], %s353
          %s355 = sand.u32 %s98, 1
          %s356 = smul.addr %s355, 16
          %s357 = scalar_lea.vmem [#allocation7], %s356
          %358 = dma.done %s354, 256
        $region52: #{tpu_custom_call.1} parent=47 // pred_fallthru
          _
      $region48: #{tpu_custom_call.1} parent=5 // pred_fallthru
        _
    $region6: #{tpu_custom_call.1} parent=1 // loop_footer
      %s20 = sadd.s32 1, %s16
    $region7: #{tpu_custom_call.1} parent=1 // loop_footer_branch
      %15 = sbr.rel target = $region3
    $region8: #{tpu_custom_call.1} parent=1 // loop_exit
      _
    %359 = vsyncpa [#allocation3], 1
    %s360 = scalar_lea.sflag [#allocation3], 1
    %361 = vsyncpa %s360, 1
    %362 = vsyncpa [#allocation6], 1
    %363 = vsyncpa [#allocation4], 1
    %s364 = scalar_lea.sflag [#allocation4], 1
    %365 = vsyncpa %s364, 1

// kernel: tpu_custom_call.1
$region0: #{tpu_custom_call.1}
  #allocation0 [shape = 'u32[]', space=smem, size = 0x4, offset = 0x4, fixed_abs, tag = 'smem constant byte address 0x4 - core index']
  #allocation1 [shape = 'u32[144,128]{1,0:T(1,128)}', space=vmem, size = 0x12000, scoped, tag = 'internal scratch']
  %s0 = inlined_call_operand.hbm [shape: f32[19,32], index: 0, kind: input, shape index: {}]
  %s1 = inlined_call_operand.hbm [shape: f32[32,64], index: 1, kind: input, shape index: {}]
  %s2 = inlined_call_operand.vmem [shape: f32[1,64], index: 2, kind: input, shape index: {}]
  %s3 = inlined_call_operand.hbm [shape: f32[19,64], index: 3, kind: output, shape index: {}]
  %s4 = sld [smem:[#allocation0]]
  $region53: #{tpu_custom_call.1} parent=0
    _
  %s6 = ssub.s32 1, %s4
  %s7 = scalar_select 0, %s6, %s4
  $region1: #{tpu_custom_call.1} parent=0
    #allocation2 [shape = 'u8[16384]{0}', space=vmem, size = 0x4000, scoped, tag = 'input window, operand 0']
    #allocation3 [shape = 's32[2]{0}', space=sflag, size = 0x8, scoped, tag = 'scoped memory for tpu_custom_call.1']
    #allocation4 [shape = 's32[2]{0}', space=sflag, size = 0x8, scoped, tag = 'scoped memory for tpu_custom_call.1']
    #allocation5 [shape = 'u8[16384]{0}', space=vmem, size = 0x4000, scoped, tag = 'input window, operand 1, single buffered']
    #allocation6 [shape = 's32[1]{0}', space=sflag, size = 0x4, scoped, tag = 'scoped memory for tpu_custom_call.1']
    #allocation7 [shape = 'u8[16384]{0}', space=vmem, size = 0x4000, scoped, tag = 'output window, operand 0']
    %8 = vsyncpa [#allocation3], 0
    %s9 = scalar_lea.sflag [#allocation3], 1
    %10 = vsyncpa %s9, 0
    %11 = vsyncpa [#allocation6], 0
    %12 = vsyncpa [#allocation4], 0
    %s13 = scalar_lea.sflag [#allocation4], 1
    %14 = vsyncpa %s13, 0
    loop: start=0, step=1, limit=4
    $region2: #{tpu_custom_call.1} parent=1 // loop_pre_header
      _
    $region3: #{tpu_custom_call.1} parent=1 // loop_header
      %s16 = sphi 0, %s20
      %p17 = scmp.ge.s32.totalorder %s16, 4
      %s26 = sphi 0, %s28
      %s29 = sphi 0, %s26
      %s30 = sphi 0, %s29
      %s46 = sphi 0, %s30
      %s50 = sphi 0, %s50
      %s52 = sphi 0, %s50
      %s53 = sphi 0, %s52
      %s67 = sphi 0, %s53
      %s71 = sphi 0, %s71
      %s73 = sphi 0, %s71
      %s74 = sphi 0, %s73
      %s88 = sphi 0, %s74
      %s94 = sphi 0, %s96
      %s97 = sphi 0, %s94
      %s98 = sphi 0, %s97
      %s114 = sphi 0, %s98
    $region4: #{tpu_custom_call.1} parent=1 // loop_header_branch
      %19 = sbr.rel (%p17) target = $region8
    $region5: #{tpu_custom_call.1} parent=1 // loop_body
      %s21 = ssub.s32 %s16, 1
      %s22 = ssub.s32 %s16, 2
      %s23 = sadd.s32 %s16, 1
      %s24 = ssub.s32 %s16, %s23
      %p25 = scmp.eq.s32.totalorder %s24, 0
      %s27 = sadd.s32 %s26, 1
      %s28 = scalar_select %p25, %s26, %s27
      %p31 = pneg %p25
      %p32 = scmp.eq.s32.totalorder %s16, 1
      %p33 = por %p31, %p32
      %p34 = scmp.ne.s32.totalorder %s26, %s29
      %p35 = scmp.eq.s32.totalorder %s16, 0
      %p36 = por %p34, %p35
      %p37 = scmp.ne.s32.totalorder %s26, %s29
      %p38 = scmp.eq.s32.totalorder %s21, 1
      %p39 = por %p37, %p38
      %p40 = scmp.ne.s32.totalorder %s29, %s30
      %p41 = scmp.eq.s32.totalorder %s21, 0
      %p42 = por %p40, %p41
      %p43 = scmp.ne.s32.totalorder %s29, %s30
      %p44 = scmp.eq.s32.totalorder %s22, 1
      %p45 = por %p43, %p44
      %p47 = scmp.ne.s32.totalorder %s30, %s46
      %p48 = scmp.eq.s32.totalorder %s22, 0
      %p49 = por %p47, %p48
      %s51 = sadd.s32 %s50, 1
      %p54 = scmp.eq.s32.totalorder %s16, 1
      %p55 = scmp.ne.s32.totalorder %s50, %s52
      %p56 = scmp.eq.s32.totalorder %s16, 0
      %p57 = por %p55, %p56
      %p58 = scmp.ne.s32.totalorder %s50, %s52
      %p59 = scmp.eq.s32.totalorder %s21, 1
      %p60 = por %p58, %p59
      %p61 = scmp.ne.s32.totalorder %s52, %s53
      %p62 = scmp.eq.s32.totalorder %s21, 0
      %p63 = por %p61, %p62
      %p64 = scmp.ne.s32.totalorder %s52, %s53
      %p65 = scmp.eq.s32.totalorder %s22, 1
      %p66 = por %p64, %p65
      %p68 = scmp.ne.s32.totalorder %s53, %s67
      %p69 = scmp.eq.s32.totalorder %s22, 0
      %p70 = por %p68, %p69
      %s72 = sadd.s32 %s71, 1
      %p75 = scmp.eq.s32.totalorder %s16, 1
      %p76 = scmp.ne.s32.totalorder %s71, %s73
      %p77 = scmp.eq.s32.totalorder %s16, 0
      %p78 = por %p76, %p77
      %p79 = scmp.ne.s32.totalorder %s71, %s73
      %p80 = scmp.eq.s32.totalorder %s21, 1
      %p81 = por %p79, %p80
      %p82 = scmp.ne.s32.totalorder %s73, %s74
      %p83 = scmp.eq.s32.totalorder %s21, 0
      %p84 = por %p82, %p83
      %p85 = scmp.ne.s32.totalorder %s73, %s74
      %p86 = scmp.eq.s32.totalorder %s22, 1
      %p87 = por %p85, %p86
      %p89 = scmp.ne.s32.totalorder %s74, %s88
      %p90 = scmp.eq.s32.totalorder %s22, 0
      %p91 = por %p89, %p90
      %s92 = ssub.s32 %s16, %s23
      %p93 = scmp.eq.s32.totalorder %s92, 0
      %s95 = sadd.s32 %s94, 1
      %s96 = scalar_select %p93, %s94, %s95
      %p99 = pneg %p93
      %p100 = scmp.eq.s32.totalorder %s16, 1
      %p101 = por %p99, %p100
      %p102 = scmp.ne.s32.totalorder %s94, %s97
      %p103 = scmp.eq.s32.totalorder %s16, 0
      %p104 = por %p102, %p103
      %p105 = scmp.ne.s32.totalorder %s94, %s97
      %p106 = scmp.eq.s32.totalorder %s21, 1
      %p107 = por %p105, %p106
      %p108 = scmp.ne.s32.totalorder %s97, %s98
      %p109 = scmp.eq.s32.totalorder %s21, 0
      %p110 = por %p108, %p109
      %p111 = scmp.ne.s32.totalorder %s97, %s98
      %p112 = scmp.eq.s32.totalorder %s22, 1
      %p113 = por %p111, %p112
      %p115 = scmp.ne.s32.totalorder %s98, %s114
      %p116 = scmp.eq.s32.totalorder %s22, 0
      %p117 = por %p115, %p116
      %p118 = scmp.le.s32.totalorder 1, %s16
      %p119 = scmp.lt.s32.totalorder %s16, 3
      %p120 = pnand %p118, %p119
      %p121 = pneg %p120
      // Predicated region
      $region9: #{tpu_custom_call.1} parent=5 // pred_check
        _
      $region10: #{tpu_custom_call.1} parent=5 // pred_check_branch
        %123 = sbr.rel (%p120) target = $region12
      $region11: #{tpu_custom_call.1} parent=5 // pred_region
        %s124 = ssub.s32 %s16, 1
        // Predicated region
        $region13: #{tpu_custom_call.1} parent=11 // pred_check
          %p125 = pneg %p63
        $region14: #{tpu_custom_call.1} parent=11 // pred_check_branch
          %127 = sbr.rel (%p125) target = $region16
        $region15: #{tpu_custom_call.1} parent=11 // pred_region
          %s129 = ssub.s32 512, 512
          %130 = vsyncadd [#allocation6], %s129
          %s131 = sshll.u32 [#allocation5], 4
          %s132 = int_to_ptr.vmem [resolvable:$true] %s131
          %137 = dma.hbm_to_vmem [thread:$0]  %s1, 512, %s132, [#allocation6], 128, 128, 8
        $region16: #{tpu_custom_call.1} parent=11 // pred_fallthru
          _
        // Predicated region
        $region17: #{tpu_custom_call.1} parent=11 // pred_check
          %p138 = pneg %p84
        $region18: #{tpu_custom_call.1} parent=11 // pred_check_branch
          %140 = sbr.rel (%p138) target = $region20
        $region19: #{tpu_custom_call.1} parent=11 // pred_region
          _
        $region20: #{tpu_custom_call.1} parent=11 // pred_fallthru
          _
      $region12: #{tpu_custom_call.1} parent=5 // pred_fallthru
        _
      %p141 = scmp.lt.s32.totalorder %s16, 2
      // Predicated region
      $region21: #{tpu_custom_call.1} parent=5 // pred_check
        %p142 = pneg %p141
      $region22: #{tpu_custom_call.1} parent=5 // pred_check_branch
        %144 = sbr.rel (%p142) target = $region24
      $region23: #{tpu_custom_call.1} parent=5 // pred_region
        // Predicated region
        $region25: #{tpu_custom_call.1} parent=23 // pred_check
          %p145 = pneg %p36
        $region26: #{tpu_custom_call.1} parent=23 // pred_check_branch
          %147 = sbr.rel (%p145) target = $region28
        $region27: #{tpu_custom_call.1} parent=23 // pred_region
          %s148 = sand.u32 %s26, 1
          %s149 = scalar_lea.sflag [#allocation3], %s148
          %s150 = sand.u32 %s26, 1
          %s151 = smul.addr %s150, 16
          %s152 = scalar_lea.vmem [#allocation2], %s151
          %s153 = smul.u32 2, %s16
          %s154 = ssub.s32 3, %s153
          %p155 = scmp.lt.s32.totalorder %s154, 2
          %s156 = scalar_select %p155, %s154, 2
          %s157 = smul.u32 128, %s156
          %s159 = ssub.s32 256, %s157
          %160 = vsyncadd %s149, %s159
          %p161 = scmp.ne.s32.totalorder 0, %s157
          %s162 = smul.addr %s153, 128
          %s163 = scalar_lea.hbm %s0, %s162
          %s164 = smul.u32 8, %s156
          %s165 = sshll.u32 %s152, 4
          %s166 = int_to_ptr.vmem [resolvable:$true] %s165
          %s167 = sshll.u32 %s164, 4
          %171 = dma.hbm_to_vmem [thread:$0]  (%p161), %s163, %s167, %s166, %s149, 128, 128, 8
        $region28: #{tpu_custom_call.1} parent=23 // pred_fallthru
          _
      $region24: #{tpu_custom_call.1} parent=5 // pred_fallthru
        _
      %p172 = scmp.le.s32.totalorder 1, %s16
      %p173 = scmp.lt.s32.totalorder %s16, 3
      %p174 = pnand %p172, %p173
      %p175 = pneg %p174
      // Predicated region
      $region29: #{tpu_custom_call.1} parent=5 // pred_check
        _
      $region30: #{tpu_custom_call.1} parent=5 // pred_check_branch
        %177 = sbr.rel (%p174) target = $region32
      $region31: #{tpu_custom_call.1} parent=5 // pred_region
        %s178 = ssub.s32 %s16, 1
        %s179 = sand.u32 %s29, 1
        %s180 = scalar_lea.sflag [#allocation3], %s179
        %s181 = sand.u32 %s29, 1
        %s182 = smul.addr %s181, 16
        %s183 = scalar_lea.vmem [#allocation2], %s182
        // Predicated region
        $region33: #{tpu_custom_call.1} parent=31 // pred_check
          %p184 = pneg %p42
        $region34: #{tpu_custom_call.1} parent=31 // pred_check_branch
          %186 = sbr.rel (%p184) target = $region36
        $region35: #{tpu_custom_call.1} parent=31 // pred_region
          %187 = dma.done %s180, 256
        $region36: #{tpu_custom_call.1} parent=31 // pred_fallthru
          _
        // Predicated region
        $region37: #{tpu_custom_call.1} parent=31 // pred_check
          %p188 = pneg %p63
        $region38: #{tpu_custom_call.1} parent=31 // pred_check_branch
          %190 = sbr.rel (%p188) target = $region40
        $region39: #{tpu_custom_call.1} parent=31 // pred_region
          %191 = dma.done [#allocation6], 512
        $region40: #{tpu_custom_call.1} parent=31 // pred_fallthru
          _
        %s192 = sand.u32 %s29, 1
        %s193 = scalar_lea.sflag [#allocation3], %s192
        %s194 = sand.u32 %s29, 1
        %s195 = smul.addr %s194, 16
        %s196 = scalar_lea.vmem [#allocation2], %s195
        %p197 = pneg %p42
        %p198 = pneg %p39
        %p199 = pneg %p63
        %p200 = pneg %p60
        %p201 = pneg %p84
        %p202 = pneg %p81
        %p203 = pneg %p110
        %p204 = pneg %p107
        %s205 = sand.u32 %s97, 1
        %s206 = scalar_lea.sflag [#allocation4], %s205
        %s207 = sand.u32 %s97, 1
        %s208 = smul.addr %s207, 16
        %s209 = scalar_lea.vmem [#allocation7], %s208
        %s210 = smul.u32 2, %s21
        %s211 = ssub.s32 3, %s210
        %p212 = scmp.lt.s32.totalorder %s211, 2
        %s213 = scalar_select %p212, %s211, 2
        %s214 = smul.u32 128, %s213
        %s215 = smul.u32 2, %s21
        %s216 = ssub.s32 3, %s215
        %p217 = scmp.lt.s32.totalorder %s216, 2
        %s218 = scalar_select %p217, %s216, 2
        %s219 = smul.u32 128, %s218
        %v220 = vld [vmem:[%s183] sm:$0xff]
        %v221 = vld [vmem:[%s183 + $0x8] sm:$0xff]
        %v222 = vld [vmem:[#allocation5] sm:$0xff]
        %v223 = vld [vmem:[#allocation5 + $0x8] sm:$0xff]
        %v224 = vld [vmem:[#allocation5 + $0x10] sm:$0xff]
        %v225 = vld [vmem:[#allocation5 + $0x18] sm:$0xff]
        %v226 = vld [vmem:[%s2] sm:$0x1]
        %v228 = vlaneseq
        %v229 = vshrl.u32 %v228, 7
        %v230 = vsub.s32 0, %v229
        %v231 = vrot.slane %v226, %v230
        %vm233 = vcmask 261120
        %v235 = vsel %vm233, %v220, 0
        %v238 = vsel %vm233, %v221, 0
        %240 = vmatprep.subr.mxu0 0.0
        %241 = vmatpush1.msra.mxu0 0.0
        %242 = vmatprep.subr.mxu0 0.0
        %243 = vmatpush1.msra.mxu0 0.0
        %244 = vmatprep.subr.mxu0 0.0
        %245 = vmatpush1.msra.mxu0 0.0
        %246 = vmatprep.subr.mxu0 0.0
        %247 = vmatpush1.msra.mxu0 0.0
        %248 = vmatprep.subr.mxu0 0.0
        %249 = vmatpush1.msra.mxu0 0.0
        %250 = vmatprep.subr.mxu0 0.0
        %251 = vmatpush1.msra.mxu0 0.0
        %252 = vmatprep.subr.mxu0 0.0
        %253 = vmatpush1.msra.mxu0 0.0
        %254 = vmatprep.subr.mxu0 0.0
        %255 = vmatpush1.msra.mxu0 0.0
        %256 = vmatprep.subr.mxu0 0.0
        %257 = vmatpush1.msra.mxu0 0.0
        %258 = vmatprep.subr.mxu0 0.0
        %259 = vmatpush1.msra.mxu0 0.0
        %260 = vmatprep.subr.mxu0 0.0
        %261 = vmatpush1.msra.mxu0 0.0
        %262 = vmatprep.subr.mxu0 0.0
        %263 = vmatpush1.msra.mxu0 0.0
        %264 = vmatprep.subr.mxu0 0.0
        %265 = vmatpush1.msra.mxu0 %v225
        %266 = vmatprep.subr.mxu0 0.0
        %267 = vmatpush1.msra.mxu0 %v224
        %268 = vmatprep.subr.mxu0 0.0
        %269 = vmatpush1.msra.mxu0 %v223
        %270 = vmatprep.subr.mxu0 0.0
        %271 = vmatpush1.msra.mxu0 %v222
        %272 = vmatprep.subr.mxu0 0.0
        %273 = vmatpush2.msra.mxu0 0.0
        %274 = vmatprep.subr.mxu0 0.0
        %275 = vmatpush2.msra.mxu0 0.0
        %276 = vmatprep.subr.mxu0 0.0
        %277 = vmatpush2.msra.mxu0 0.0
        %278 = vmatprep.subr.mxu0 0.0
        %279 = vmatpush2.msra.mxu0 0.0
        %280 = vmatprep.subr.mxu0 0.0
        %281 = vmatpush2.msra.mxu0 0.0
        %282 = vmatprep.subr.mxu0 0.0
        %283 = vmatpush2.msra.mxu0 0.0
        %284 = vmatprep.subr.mxu0 0.0
        %285 = vmatpush2.msra.mxu0 0.0
        %286 = vmatprep.subr.mxu0 0.0
        %287 = vmatpush2.msra.mxu0 0.0
        %288 = vmatprep.subr.mxu0 0.0
        %289 = vmatpush2.msra.mxu0 0.0
        %290 = vmatprep.subr.mxu0 0.0
        %291 = vmatpush2.msra.mxu0 0.0
        %292 = vmatprep.subr.mxu0 0.0
        %293 = vmatpush2.msra.mxu0 0.0
        %294 = vmatprep.subr.mxu0 0.0
        %295 = vmatpush2.msra.mxu0 0.0
        %296 = vmatprep.subr.mxu0 0.0
        %297 = vmatpush2.msra.mxu0 0.0
        %298 = vmatprep.subr.mxu0 0.0
        %299 = vmatpush2.msra.mxu0 0.0
        %300 = vmatprep.subr.mxu0 0.0
        %301 = vmatpush2.msra.mxu0 0.0
        %302 = vmatprep.subr.mxu0 0.0
        %303 = vmatpush2.msra.mxu0 0.0
        %304 = vmatprep.mubr.f32.mxu0 0.0
        %305 = vmatmul.mubr.f32.gmra.mxu0 %v235
        %v306 = vpop.f32.mrf.mxu0
        %v307 = vadd.f32 %v231, %v306
        %v308 = vpop.f32.mrf.mxu0
        %309 = vmatprep.mubr.f32.mxu0 0.0
        %310 = vmatmul.mubr.f32.gmra.mxu0 %v238
        %v311 = vpop.f32.mrf.mxu0
        %v312 = vadd.f32 %v231, %v311
        %v313 = vpop.f32.mrf.mxu0
        %314 = vdwg.mxu0
        %vm315 = vcmask 523264
        %316 = vst.msk [vmem:[%s209] sm:$0xff] %vm315, %v307
        %317 = vst.msk [vmem:[%s209 + $0x8] sm:$0xff] %vm315, %v312
        %s318 = sand.u32 %s97, 1
        %s319 = scalar_lea.sflag [#allocation4], %s318
        %s320 = sand.u32 %s97, 1
        %s321 = smul.addr %s320, 16
        %s322 = scalar_lea.vmem [#allocation7], %s321
        // Predicated region
        $region41: #{tpu_custom_call.1} parent=31 // pred_check
          %p323 = pneg %p107
        $region42: #{tpu_custom_call.1} parent=31 // pred_check_branch
          %325 = sbr.rel (%p323) target = $region44
        $region43: #{tpu_custom_call.1} parent=31 // pred_region
          %s326 = smul.u32 2, %s21
          %s327 = ssub.s32 3, %s326
          %p328 = scmp.lt.s32.totalorder %s327, 2
          %s329 = scalar_select %p328, %s327, 2
          %s330 = smul.u32 128, %s329
          %s332 = ssub.s32 256, %s330
          %333 = vsyncadd %s319, %s332
          %p334 = scmp.ne.s32.totalorder 0, %s330
          %s335 = smul.addr %s326, 128
          %s336 = scalar_lea.hbm %s3, %s335
          %s337 = smul.u32 8, %s329
          %s338 = sshll.u32 %s322, 4
          %s339 = int_to_ptr.vmem [resolvable:$true] %s338
          %s340 = sshll.u32 %s337, 4
          %344 = dma.vmem_to_hbm [thread:$0]  (%p334), %s339, %s340, %s336, %s319, 128, 128, 8
        $region44: #{tpu_custom_call.1} parent=31 // pred_fallthru
          _
      $region32: #{tpu_custom_call.1} parent=5 // pred_fallthru
        _
      %p345 = scmp.le.s32.totalorder 2, %s16
      // Predicated region
      $region45: #{tpu_custom_call.1} parent=5 // pred_check
        %p346 = pneg %p345
      $region46: #{tpu_custom_call.1} parent=5 // pred_check_branch
        %348 = sbr.rel (%p346) target = $region48
      $region47: #{tpu_custom_call.1} parent=5 // pred_region
        %s349 = ssub.s32 %s16, 2
        // Predicated region
        $region49: #{tpu_custom_call.1} parent=47 // pred_check
          %p350 = pneg %p113
        $region50: #{tpu_custom_call.1} parent=47 // pred_check_branch
          %352 = sbr.rel (%p350) target = $region52
        $region51: #{tpu_custom_call.1} parent=47 // pred_region
          %s353 = sand.u32 %s98, 1
          %s354 = scalar_lea.sflag [#allocation4], %s353
          %s355 = sand.u32 %s98, 1
          %s356 = smul.addr %s355, 16
          %s357 = scalar_lea.vmem [#allocation7], %s356
          %358 = dma.done %s354, 256
        $region52: #{tpu_custom_call.1} parent=47 // pred_fallthru
          _
      $region48: #{tpu_custom_call.1} parent=5 // pred_fallthru
        _
    $region6: #{tpu_custom_call.1} parent=1 // loop_footer
      %s20 = sadd.s32 1, %s16
    $region7: #{tpu_custom_call.1} parent=1 // loop_footer_branch
      %15 = sbr.rel target = $region3
    $region8: #{tpu_custom_call.1} parent=1 // loop_exit
      _
    %359 = vsyncpa [#allocation3], 1
    %s360 = scalar_lea.sflag [#allocation3], 1
    %361 = vsyncpa %s360, 1
    %362 = vsyncpa [#allocation6], 1
    %363 = vsyncpa [#allocation4], 1
    %s364 = scalar_lea.sflag [#allocation4], 1
    %365 = vsyncpa %s364, 1

</llo_original>
